<compile_context>
chip_gen: v7x
topology: tpu7x:2x2x1
jax: 0.10.0
libtpu: 0.0.40
codegen_flags: <defaults>
</compile_context>

<pallas_src>
import math
from functools import partial

import jax
import jax.numpy as jnp
from jax.experimental import pallas as pl
from jax.experimental.pallas import tpu as pltpu


# ----------------------------- Pallas kernel ------------------------------ #

def _adain_kernel(style_ref, wg_ref, wb_ref, bg_ref, bb_ref, x_ref, o_ref, *,
                  hw, eps):
    """Fused AdaptiveInstanceNorm for one (channel-tile, sample) grid step.

    style_ref: (1, sd)   style vector of this sample
    wg_ref:    (tc, sd)  EqualLR-scaled gamma weight rows for this channel tile
    wb_ref:    (tc, sd)  EqualLR-scaled beta  weight rows for this channel tile
    bg_ref:    (tc, 1)   gamma bias
    bb_ref:    (tc, 1)   beta  bias
    x_ref:     (tc, hw)  input rows (lane-dense spatial axis)
    o_ref:     (tc, hw)  output rows
    """
    s = style_ref[...]                                        # (1, sd)
    # EqualLinear projection restricted to this channel tile:
    #   gamma[c] = <wg[c,:], s> + bg[c],   beta[c] = <wb[c,:], s> + bb[c]
    # done as a VPU broadcast-multiply + lane reduction (tiny mat-vec; avoids
    # a degenerate 1-wide MXU matmul).
    gamma = jnp.sum(wg_ref[...] * s, axis=1, keepdims=True) + bg_ref[...]   # (tc, 1)
    beta = jnp.sum(wb_ref[...] * s, axis=1, keepdims=True) + bb_ref[...]    # (tc, 1)

    # InstanceNorm2d statistics over the lane-dense H*W axis (biased variance).
    x = x_ref[...]                                            # (tc, hw)
    inv_hw = 1.0 / hw
    mean = jnp.sum(x, axis=1, keepdims=True) * inv_hw
    xc = x - mean
    var = jnp.sum(xc * xc, axis=1, keepdims=True) * inv_hw
    scale = gamma * jax.lax.rsqrt(var + eps)                  # gamma / sqrt(var+eps)
    o_ref[...] = (scale * xc + beta).astype(o_ref.dtype)


# ------------------------------- wrapper ----------------------------------- #

def _pick_channel_tile(c, hw, dtype_bytes=4, tile_bytes_budget=4 << 20):
    """Channel-tile size: full C when small, otherwise a multiple of 8 bounded
    so the double-buffered (tc, HW) in+out tiles stay near the VMEM budget."""
    if c <= 8:
        return c                                   # full dim satisfies (8,128) rule
    by_budget = tile_bytes_budget // max(4 * hw * dtype_bytes, 1)
    return max(8, min(c, (by_budget // 8) * 8))


def adaptive_instance_norm(x_nchw, style, w_orig, bias, *, eps=1e-5):
    """AdaptiveInstanceNorm forward.

    x_nchw: (N, C, H, W) float32
    style:  (N, style_dim) float32
    w_orig: (2C, style_dim) EqualLinear weight_orig (N(0,1) init)
    bias:   (2C,) EqualLinear bias (first C entries 1, rest 0)
    """
    n, c, h, wd = x_nchw.shape
    sd = style.shape[1]
    hw = h * wd

    # EqualLR: weight = weight_orig * sqrt(2 / fan_in), fan_in = style_dim.
    w = w_orig.astype(jnp.float32) * math.sqrt(2.0 / sd)      # (2C, sd)
    wg, wb = w[:c], w[c:]                                     # (C, sd) each
    b = bias.astype(jnp.float32)
    bg = b[:c].reshape(c, 1)
    bb = b[c:].reshape(c, 1)

    # (N, C, H, W) -> (N, C, H*W) is a free, contiguous view; H*W lands on the
    # 128-lane axis.  Style gets a leading per-sample block axis.
    x3 = x_nchw.astype(jnp.float32).reshape(n, c, hw)
    style3 = style.astype(jnp.float32).reshape(n, 1, sd)

    tc = _pick_channel_tile(c, hw)
    c_tiles = pl.cdiv(c, tc)
    c_pad = c_tiles * tc
    if c_pad != c:
        pc = c_pad - c
        x3 = jnp.pad(x3, ((0, 0), (0, pc), (0, 0)))
        wg = jnp.pad(wg, ((0, pc), (0, 0)))
        wb = jnp.pad(wb, ((0, pc), (0, 0)))
        bg = jnp.pad(bg, ((0, pc), (0, 0)))
        bb = jnp.pad(bb, ((0, pc), (0, 0)))

    # Grid: channel tiles outer, batch inner -> weight/bias block indices are
    # constant across the inner axis, so Pallas keeps those tiles resident.
    grid = (c_tiles, n)

    out3 = pl.pallas_call(
        partial(_adain_kernel, hw=hw, eps=eps),
        out_shape=jax.ShapeDtypeStruct((n, c_pad, hw), jnp.float32),
        grid_spec=pltpu.PrefetchScalarGridSpec(
            num_scalar_prefetch=0,
            grid=grid,
            in_specs=[
                pl.BlockSpec((None, 1, sd), lambda ct, b_: (b_, 0, 0)),   # style (1, sd)
                pl.BlockSpec((tc, sd), lambda ct, b_: (ct, 0)),           # gamma weight tile
                pl.BlockSpec((tc, sd), lambda ct, b_: (ct, 0)),           # beta  weight tile
                pl.BlockSpec((tc, 1), lambda ct, b_: (ct, 0)),            # gamma bias tile
                pl.BlockSpec((tc, 1), lambda ct, b_: (ct, 0)),            # beta  bias tile
                pl.BlockSpec((None, tc, hw), lambda ct, b_: (b_, ct, 0)),  # input tile
            ],
            out_specs=pl.BlockSpec((None, tc, hw), lambda ct, b_: (b_, ct, 0)),
        ),
        compiler_params=pltpu.CompilerParams(
            dimension_semantics=("parallel", "parallel")),
        cost_estimate=pl.CostEstimate(
            flops=4 * n * c_pad * sd + 7 * n * c_pad * hw,
            transcendentals=n * c_pad,
            bytes_accessed=(2 * n * c_pad * hw + n * sd
                            + 2 * c_pad * (sd + 1)) * 4),
    )(style3, wg, wb, bg, bb, x3)

    return out3[:, :c, :].reshape(n, c, h, wd)


# ------------------------- parameters (EqualLR init) ----------------------- #

def init_adain_params(key, in_channel, style_dim):
    # nn.Linear weight ~ N(0,1) (weight_orig); bias: first C entries 1, rest 0.
    w_orig = jax.random.normal(key, (2 * in_channel, style_dim), jnp.float32)
    bias = jnp.concatenate([jnp.ones((in_channel,), jnp.float32),
                            jnp.zeros((in_channel,), jnp.float32)])
    return {"w_orig": w_orig, "bias": bias}


# ------------------------------- reference --------------------------------- #

def _ref_adain(x_nchw, style, w_orig, bias, eps=1e-5):
    c = x_nchw.shape[1]
    sd = style.shape[1]
    w = w_orig * math.sqrt(2.0 / sd)
    s = style @ w.T + bias                         # (N, 2C)
    gamma = s[:, :c][:, :, None, None]
    beta = s[:, c:][:, :, None, None]
    mean = x_nchw.mean(axis=(2, 3), keepdims=True)
    var = x_nchw.var(axis=(2, 3), keepdims=True)   # biased, like InstanceNorm2d
    out = (x_nchw - mean) / jnp.sqrt(var + eps)
    return gamma * out + beta


if __name__ == "__main__":
    key = jax.random.PRNGKey(0)
    kx, ks, kw = jax.random.split(key, 3)

    batch, in_channel, style_dim, spatial = 2, 4, 32, 16
    x = jax.random.normal(kx, (batch, in_channel, spatial, spatial), jnp.float32)
    style = jax.random.normal(ks, (batch, style_dim), jnp.float32)
    params = init_adain_params(kw, in_channel, style_dim)

    fwd = jax.jit(adaptive_instance_norm)
    out = fwd(x, style, params["w_orig"], params["bias"])
    jax.block_until_ready(out)

    out_ref = _ref_adain(x, style, params["w_orig"], params["bias"])
    assert out.shape == (batch, in_channel, spatial, spatial), out.shape
    max_err = float(jnp.max(jnp.abs(out - out_ref)))
    assert jnp.allclose(out, out_ref, atol=1e-4, rtol=1e-4), max_err

    print("KERNEL_OK")
</pallas_src>

<mosaic_0001>
module attributes {stable_mosaic.version = 11 : i64} {
  func.func @_adain_kernel(%arg0: i32, %arg1: i32, %arg2: memref<1x1x32xf32, #tpu.memory_space<vmem>>, %arg3: memref<4x32xf32, #tpu.memory_space<vmem>>, %arg4: memref<4x32xf32, #tpu.memory_space<vmem>>, %arg5: memref<4x1xf32, #tpu.memory_space<vmem>>, %arg6: memref<4x1xf32, #tpu.memory_space<vmem>>, %arg7: memref<1x4x256xf32, #tpu.memory_space<vmem>>, %arg8: memref<1x4x256xf32, #tpu.memory_space<vmem>>) attributes {dimension_semantics = [#tpu.dimension_semantics<parallel>, #tpu.dimension_semantics<parallel>], iteration_bounds = array<i64: 1, 2>, scalar_prefetch = 0 : i64, scratch_operands = 0 : i64, tpu.core_type = #tpu.core_type<tc>, window_params = [{transform_indices = @transform_0, window_bounds = array<i64: 1, 1, 32>}, {transform_indices = @transform_1, window_bounds = array<i64: 4, 32>}, {transform_indices = @transform_2, window_bounds = array<i64: 4, 32>}, {transform_indices = @transform_3, window_bounds = array<i64: 4, 1>}, {transform_indices = @transform_4, window_bounds = array<i64: 4, 1>}, {transform_indices = @transform_5, window_bounds = array<i64: 1, 4, 256>}, {transform_indices = @transform_6, window_bounds = array<i64: 1, 4, 256>}]} {
    %c0 = arith.constant 0 : index
    %c0_0 = arith.constant 0 : index
    %c0_1 = arith.constant 0 : index
    %0 = vector.load %arg2[%c0, %c0_0, %c0_1] : memref<1x1x32xf32, #tpu.memory_space<vmem>>, vector<1x1x32xf32>
    %1 = vector.shape_cast %0 : vector<1x1x32xf32> to vector<1x32xf32>
    %c0_2 = arith.constant 0 : index
    %c0_3 = arith.constant 0 : index
    %2 = vector.load %arg3[%c0_2, %c0_3] : memref<4x32xf32, #tpu.memory_space<vmem>>, vector<4x32xf32>
    %3 = vector.broadcast %1 : vector<1x32xf32> to vector<4x32xf32>
    %4 = arith.mulf %2, %3 : vector<4x32xf32>
    %cst = arith.constant dense<0.000000e+00> : vector<4xf32>
    %5 = vector.multi_reduction <add>, %4, %cst [1] : vector<4x32xf32> to vector<4xf32>
    %6 = vector.shape_cast %5 : vector<4xf32> to vector<4x1xf32>
    %c0_4 = arith.constant 0 : index
    %c0_5 = arith.constant 0 : index
    %7 = vector.load %arg5[%c0_4, %c0_5] : memref<4x1xf32, #tpu.memory_space<vmem>>, vector<4x1xf32>
    %8 = arith.addf %6, %7 : vector<4x1xf32>
    %c0_6 = arith.constant 0 : index
    %c0_7 = arith.constant 0 : index
    %9 = vector.load %arg4[%c0_6, %c0_7] : memref<4x32xf32, #tpu.memory_space<vmem>>, vector<4x32xf32>
    %10 = vector.broadcast %1 : vector<1x32xf32> to vector<4x32xf32>
    %11 = arith.mulf %9, %10 : vector<4x32xf32>
    %cst_8 = arith.constant dense<0.000000e+00> : vector<4xf32>
    %12 = vector.multi_reduction <add>, %11, %cst_8 [1] : vector<4x32xf32> to vector<4xf32>
    %13 = vector.shape_cast %12 : vector<4xf32> to vector<4x1xf32>
    %c0_9 = arith.constant 0 : index
    %c0_10 = arith.constant 0 : index
    %14 = vector.load %arg6[%c0_9, %c0_10] : memref<4x1xf32, #tpu.memory_space<vmem>>, vector<4x1xf32>
    %15 = arith.addf %13, %14 : vector<4x1xf32>
    %c0_11 = arith.constant 0 : index
    %c0_12 = arith.constant 0 : index
    %c0_13 = arith.constant 0 : index
    %16 = vector.load %arg7[%c0_11, %c0_12, %c0_13] : memref<1x4x256xf32, #tpu.memory_space<vmem>>, vector<1x4x256xf32>
    %17 = vector.shape_cast %16 : vector<1x4x256xf32> to vector<4x256xf32>
    %cst_14 = arith.constant dense<0.000000e+00> : vector<4xf32>
    %18 = vector.multi_reduction <add>, %17, %cst_14 [1] : vector<4x256xf32> to vector<4xf32>
    %19 = vector.shape_cast %18 : vector<4xf32> to vector<4x1xf32>
    %cst_15 = arith.constant 3.906250e-03 : f32
    %20 = vector.broadcast %cst_15 : f32 to vector<4x1xf32>
    %21 = arith.mulf %19, %20 : vector<4x1xf32>
    %22 = vector.broadcast %21 : vector<4x1xf32> to vector<4x256xf32>
    %23 = arith.subf %17, %22 : vector<4x256xf32>
    %24 = arith.mulf %23, %23 : vector<4x256xf32>
    %cst_16 = arith.constant dense<0.000000e+00> : vector<4xf32>
    %25 = vector.multi_reduction <add>, %24, %cst_16 [1] : vector<4x256xf32> to vector<4xf32>
    %26 = vector.shape_cast %25 : vector<4xf32> to vector<4x1xf32>
    %cst_17 = arith.constant 3.906250e-03 : f32
    %27 = vector.broadcast %cst_17 : f32 to vector<4x1xf32>
    %28 = arith.mulf %26, %27 : vector<4x1xf32>
    %cst_18 = arith.constant 9.99999974E-6 : f32
    %29 = vector.broadcast %cst_18 : f32 to vector<4x1xf32>
    %30 = arith.addf %28, %29 : vector<4x1xf32>
    %31 = math.rsqrt %30 : vector<4x1xf32>
    %32 = arith.mulf %8, %31 : vector<4x1xf32>
    %33 = vector.broadcast %32 : vector<4x1xf32> to vector<4x256xf32>
    %34 = arith.mulf %33, %23 : vector<4x256xf32>
    %35 = vector.broadcast %15 : vector<4x1xf32> to vector<4x256xf32>
    %36 = arith.addf %34, %35 : vector<4x256xf32>
    %c0_19 = arith.constant 0 : index
    %c0_20 = arith.constant 0 : index
    %c0_21 = arith.constant 0 : index
    %37 = vector.load %arg8[%c0_19, %c0_20, %c0_21] : memref<1x4x256xf32, #tpu.memory_space<vmem>>, vector<1x4x256xf32>
    %38 = vector.shape_cast %37 : vector<1x4x256xf32> to vector<4x256xf32>
    %39 = vector.shape_cast %36 : vector<4x256xf32> to vector<1x4x256xf32>
    tpu.vector_store %arg8[%c0_19, %c0_20, %c0_21], %39 {strides = array<i32>} : memref<1x4x256xf32, #tpu.memory_space<vmem>>, vector<1x4x256xf32>,
    return
  }
  func.func @transform_0(%arg0: i32, %arg1: i32) -> (i32, i32, i32) {
    %c0_i32 = arith.constant 0 : i32
    %c0_i32_0 = arith.constant 0 : i32
    %c0_i32_1 = arith.constant 0 : i32
    return %arg1, %c0_i32, %c0_i32_0 : i32, i32, i32
  }
  func.func @transform_1(%arg0: i32, %arg1: i32) -> (i32, i32) {
    %c0_i32 = arith.constant 0 : i32
    %c0_i32_0 = arith.constant 0 : i32
    return %arg0, %c0_i32 : i32, i32
  }
  func.func @transform_2(%arg0: i32, %arg1: i32) -> (i32, i32) {
    %c0_i32 = arith.constant 0 : i32
    %c0_i32_0 = arith.constant 0 : i32
    return %arg0, %c0_i32 : i32, i32
  }
  func.func @transform_3(%arg0: i32, %arg1: i32) -> (i32, i32) {
    %c0_i32 = arith.constant 0 : i32
    %c0_i32_0 = arith.constant 0 : i32
    return %arg0, %c0_i32 : i32, i32
  }
  func.func @transform_4(%arg0: i32, %arg1: i32) -> (i32, i32) {
    %c0_i32 = arith.constant 0 : i32
    %c0_i32_0 = arith.constant 0 : i32
    return %arg0, %c0_i32 : i32, i32
  }
  func.func @transform_5(%arg0: i32, %arg1: i32) -> (i32, i32, i32) {
    %c0_i32 = arith.constant 0 : i32
    %c0_i32_0 = arith.constant 0 : i32
    return %arg1, %arg0, %c0_i32 : i32, i32, i32
  }
  func.func @transform_6(%arg0: i32, %arg1: i32) -> (i32, i32, i32) {
    %c0_i32 = arith.constant 0 : i32
    %c0_i32_0 = arith.constant 0 : i32
    return %arg1, %arg0, %c0_i32 : i32, i32, i32
  }
}

</mosaic_0001>

<llo_original>
// kernel: adaptive_instance_norm.1
$region0: #{adaptive_instance_norm.1}
  #allocation0 [shape = 'u32[]', space=smem, size = 0x4, offset = 0x4, fixed_abs, tag = 'smem constant byte address 0x4 - core index']
  #allocation1 [shape = 'u32[144,128]{1,0:T(1,128)}', space=vmem, size = 0x12000, scoped, tag = 'internal scratch']
  %s0 = inlined_call_operand.vmem [shape: f32[2,1,32], index: 0, kind: input, shape index: {}]
  %s1 = inlined_call_operand.vmem [shape: f32[4,32], index: 1, kind: input, shape index: {}]
  %s2 = inlined_call_operand.vmem [shape: f32[4,32], index: 2, kind: input, shape index: {}]
  %s3 = inlined_call_operand.vmem [shape: f32[4,1], index: 3, kind: input, shape index: {}]
  %s4 = inlined_call_operand.vmem [shape: f32[4,1], index: 4, kind: input, shape index: {}]
  %s5 = inlined_call_operand.vmem [shape: f32[2,4,256], index: 5, kind: input, shape index: {}]
  %s6 = inlined_call_operand.vmem [shape: f32[2,4,256], index: 6, kind: output, shape index: {}]
  %s7 = sld [smem:[#allocation0]]
  $region57: #{adaptive_instance_norm.1} parent=0
    _
  %s9 = ssub.s32 1, %s7
  %s10 = scalar_select 0, %s9, %s7
  loop: start=0, step=1, limit=4
  $region2: #{adaptive_instance_norm.1} parent=0 // loop_pre_header
    _
  $region3: #{adaptive_instance_norm.1} parent=0 // loop_header
    %s12 = sphi 0, %s16
    %p13 = scmp.ge.s32.totalorder %s12, 4
    %s19 = sphi 0, %s31
    %s20 = sphi 0, %s27
    %s21 = sphi 0, %s19
    %s22 = sphi 0, %s20
    %s23 = sphi 0, %s21
    %s24 = sphi 0, %s22
    %s34 = sphi 0, %s36
    %s37 = sphi 0, %s34
    %s38 = sphi 0, %s37
    %s54 = sphi 0, %s38
    %s60 = sphi 0, %s62
    %s63 = sphi 0, %s60
    %s64 = sphi 0, %s63
    %s80 = sphi 0, %s64
    %s86 = sphi 0, %s88
    %s89 = sphi 0, %s86
    %s90 = sphi 0, %s89
    %s106 = sphi 0, %s90
    %s112 = sphi 0, %s114
    %s115 = sphi 0, %s112
    %s116 = sphi 0, %s115
    %s132 = sphi 0, %s116
    %s138 = sphi 0, %s140
    %s141 = sphi 0, %s138
    %s142 = sphi 0, %s141
    %s158 = sphi 0, %s142
    %s166 = sphi 0, %s168
    %s169 = sphi 0, %s166
    %s170 = sphi 0, %s169
    %s186 = sphi 0, %s170
    %s194 = sphi 0, %s196
    %s197 = sphi 0, %s194
    %s198 = sphi 0, %s197
    %s214 = sphi 0, %s198
  $region4: #{adaptive_instance_norm.1} parent=0 // loop_header_branch
    %15 = sbr.rel (%p13) target = $region8
  $region5: #{adaptive_instance_norm.1} parent=0 // loop_body
    %s17 = ssub.s32 %s12, 1
    %s18 = ssub.s32 %s12, 2
    %s25 = sadd.s32 1, %s20
    %p26 = scmp.ge.s32.totalorder %s25, 2
    %s27 = scalar_select %p26, 0, %s25
    %s28 = sadd.s32 1, %s19
    %s29 = scalar_select %p26, %s28, %s19
    %p30 = scmp.ge.s32.totalorder %s29, 1
    %s31 = scalar_select %p30, 0, %s29
    %s32 = ssub.s32 %s20, %s27
    %p33 = scmp.eq.s32.totalorder %s32, 0
    %s35 = sadd.s32 %s34, 1
    %s36 = scalar_select %p33, %s34, %s35
    %p39 = pneg %p33
    %p40 = scmp.eq.s32.totalorder %s12, 1
    %p41 = por %p39, %p40
    %p42 = scmp.ne.s32.totalorder %s34, %s37
    %p43 = scmp.eq.s32.totalorder %s12, 0
    %p44 = por %p42, %p43
    %p45 = scmp.ne.s32.totalorder %s34, %s37
    %p46 = scmp.eq.s32.totalorder %s17, 1
    %p47 = por %p45, %p46
    %p48 = scmp.ne.s32.totalorder %s37, %s38
    %p49 = scmp.eq.s32.totalorder %s17, 0
    %p50 = por %p48, %p49
    %p51 = scmp.ne.s32.totalorder %s37, %s38
    %p52 = scmp.eq.s32.totalorder %s18, 1
    %p53 = por %p51, %p52
    %p55 = scmp.ne.s32.totalorder %s38, %s54
    %p56 = scmp.eq.s32.totalorder %s18, 0
    %p57 = por %p55, %p56
    %s58 = ssub.s32 %s19, %s31
    %p59 = scmp.eq.s32.totalorder %s58, 0
    %s61 = sadd.s32 %s60, 1
    %s62 = scalar_select %p59, %s60, %s61
    %p65 = pneg %p59
    %p66 = scmp.eq.s32.totalorder %s12, 1
    %p67 = por %p65, %p66
    %p68 = scmp.ne.s32.totalorder %s60, %s63
    %p69 = scmp.eq.s32.totalorder %s12, 0
    %p70 = por %p68, %p69
    %p71 = scmp.ne.s32.totalorder %s60, %s63
    %p72 = scmp.eq.s32.totalorder %s17, 1
    %p73 = por %p71, %p72
    %p74 = scmp.ne.s32.totalorder %s63, %s64
    %p75 = scmp.eq.s32.totalorder %s17, 0
    %p76 = por %p74, %p75
    %p77 = scmp.ne.s32.totalorder %s63, %s64
    %p78 = scmp.eq.s32.totalorder %s18, 1
    %p79 = por %p77, %p78
    %p81 = scmp.ne.s32.totalorder %s64, %s80
    %p82 = scmp.eq.s32.totalorder %s18, 0
    %p83 = por %p81, %p82
    %s84 = ssub.s32 %s19, %s31
    %p85 = scmp.eq.s32.totalorder %s84, 0
    %s87 = sadd.s32 %s86, 1
    %s88 = scalar_select %p85, %s86, %s87
    %p91 = pneg %p85
    %p92 = scmp.eq.s32.totalorder %s12, 1
    %p93 = por %p91, %p92
    %p94 = scmp.ne.s32.totalorder %s86, %s89
    %p95 = scmp.eq.s32.totalorder %s12, 0
    %p96 = por %p94, %p95
    %p97 = scmp.ne.s32.totalorder %s86, %s89
    %p98 = scmp.eq.s32.totalorder %s17, 1
    %p99 = por %p97, %p98
    %p100 = scmp.ne.s32.totalorder %s89, %s90
    %p101 = scmp.eq.s32.totalorder %s17, 0
    %p102 = por %p100, %p101
    %p103 = scmp.ne.s32.totalorder %s89, %s90
    %p104 = scmp.eq.s32.totalorder %s18, 1
    %p105 = por %p103, %p104
    %p107 = scmp.ne.s32.totalorder %s90, %s106
    %p108 = scmp.eq.s32.totalorder %s18, 0
    %p109 = por %p107, %p108
    %s110 = ssub.s32 %s19, %s31
    %p111 = scmp.eq.s32.totalorder %s110, 0
    %s113 = sadd.s32 %s112, 1
    %s114 = scalar_select %p111, %s112, %s113
    %p117 = pneg %p111
    %p118 = scmp.eq.s32.totalorder %s12, 1
    %p119 = por %p117, %p118
    %p120 = scmp.ne.s32.totalorder %s112, %s115
    %p121 = scmp.eq.s32.totalorder %s12, 0
    %p122 = por %p120, %p121
    %p123 = scmp.ne.s32.totalorder %s112, %s115
    %p124 = scmp.eq.s32.totalorder %s17, 1
    %p125 = por %p123, %p124
    %p126 = scmp.ne.s32.totalorder %s115, %s116
    %p127 = scmp.eq.s32.totalorder %s17, 0
    %p128 = por %p126, %p127
    %p129 = scmp.ne.s32.totalorder %s115, %s116
    %p130 = scmp.eq.s32.totalorder %s18, 1
    %p131 = por %p129, %p130
    %p133 = scmp.ne.s32.totalorder %s116, %s132
    %p134 = scmp.eq.s32.totalorder %s18, 0
    %p135 = por %p133, %p134
    %s136 = ssub.s32 %s19, %s31
    %p137 = scmp.eq.s32.totalorder %s136, 0
    %s139 = sadd.s32 %s138, 1
    %s140 = scalar_select %p137, %s138, %s139
    %p143 = pneg %p137
    %p144 = scmp.eq.s32.totalorder %s12, 1
    %p145 = por %p143, %p144
    %p146 = scmp.ne.s32.totalorder %s138, %s141
    %p147 = scmp.eq.s32.totalorder %s12, 0
    %p148 = por %p146, %p147
    %p149 = scmp.ne.s32.totalorder %s138, %s141
    %p150 = scmp.eq.s32.totalorder %s17, 1
    %p151 = por %p149, %p150
    %p152 = scmp.ne.s32.totalorder %s141, %s142
    %p153 = scmp.eq.s32.totalorder %s17, 0
    %p154 = por %p152, %p153
    %p155 = scmp.ne.s32.totalorder %s141, %s142
    %p156 = scmp.eq.s32.totalorder %s18, 1
    %p157 = por %p155, %p156
    %p159 = scmp.ne.s32.totalorder %s142, %s158
    %p160 = scmp.eq.s32.totalorder %s18, 0
    %p161 = por %p159, %p160
    %s162 = ssub.s32 %s20, %s27
    %s163 = ssub.s32 %s19, %s31
    %s164 = sor.u32 %s162, %s163
    %p165 = scmp.eq.s32.totalorder %s164, 0
    %s167 = sadd.s32 %s166, 1
    %s168 = scalar_select %p165, %s166, %s167
    %p171 = pneg %p165
    %p172 = scmp.eq.s32.totalorder %s12, 1
    %p173 = por %p171, %p172
    %p174 = scmp.ne.s32.totalorder %s166, %s169
    %p175 = scmp.eq.s32.totalorder %s12, 0
    %p176 = por %p174, %p175
    %p177 = scmp.ne.s32.totalorder %s166, %s169
    %p178 = scmp.eq.s32.totalorder %s17, 1
    %p179 = por %p177, %p178
    %p180 = scmp.ne.s32.totalorder %s169, %s170
    %p181 = scmp.eq.s32.totalorder %s17, 0
    %p182 = por %p180, %p181
    %p183 = scmp.ne.s32.totalorder %s169, %s170
    %p184 = scmp.eq.s32.totalorder %s18, 1
    %p185 = por %p183, %p184
    %p187 = scmp.ne.s32.totalorder %s170, %s186
    %p188 = scmp.eq.s32.totalorder %s18, 0
    %p189 = por %p187, %p188
    %s190 = ssub.s32 %s20, %s27
    %s191 = ssub.s32 %s19, %s31
    %s192 = sor.u32 %s190, %s191
    %p193 = scmp.eq.s32.totalorder %s192, 0
    %s195 = sadd.s32 %s194, 1
    %s196 = scalar_select %p193, %s194, %s195
    %p199 = pneg %p193
    %p200 = scmp.eq.s32.totalorder %s12, 1
    %p201 = por %p199, %p200
    %p202 = scmp.ne.s32.totalorder %s194, %s197
    %p203 = scmp.eq.s32.totalorder %s12, 0
    %p204 = por %p202, %p203
    %p205 = scmp.ne.s32.totalorder %s194, %s197
    %p206 = scmp.eq.s32.totalorder %s17, 1
    %p207 = por %p205, %p206
    %p208 = scmp.ne.s32.totalorder %s197, %s198
    %p209 = scmp.eq.s32.totalorder %s17, 0
    %p210 = por %p208, %p209
    %p211 = scmp.ne.s32.totalorder %s197, %s198
    %p212 = scmp.eq.s32.totalorder %s18, 1
    %p213 = por %p211, %p212
    %p215 = scmp.ne.s32.totalorder %s198, %s214
    %p216 = scmp.eq.s32.totalorder %s18, 0
    %p217 = por %p215, %p216
    %p218 = scmp.le.s32.totalorder 1, %s12
    %p219 = scmp.lt.s32.totalorder %s12, 3
    %p220 = pnand %p218, %p219
    %p221 = pneg %p220
    // Predicated region
    $region9: #{adaptive_instance_norm.1} parent=5 // pred_check
      _
    $region10: #{adaptive_instance_norm.1} parent=5 // pred_check_branch
      %223 = sbr.rel (%p220) target = $region12
    $region11: #{adaptive_instance_norm.1} parent=5 // pred_region
      %s224 = ssub.s32 %s12, 1
      // Predicated region
      $region13: #{adaptive_instance_norm.1} parent=11 // pred_check
        %p225 = pneg %p76
      $region14: #{adaptive_instance_norm.1} parent=11 // pred_check_branch
        %227 = sbr.rel (%p225) target = $region16
      $region15: #{adaptive_instance_norm.1} parent=11 // pred_region
        %p228 = scmp.lt.s32.totalorder %s21, 0
        %s229 = scalar_select %p228, %s21, 0
        %s230 = smul.addr %s229, 4
        %s231 = scalar_lea.vmem %s1, %s230
      $region16: #{adaptive_instance_norm.1} parent=11 // pred_fallthru
        _
      // Predicated region
      $region17: #{adaptive_instance_norm.1} parent=11 // pred_check
        %p232 = pneg %p102
      $region18: #{adaptive_instance_norm.1} parent=11 // pred_check_branch
        %234 = sbr.rel (%p232) target = $region20
      $region19: #{adaptive_instance_norm.1} parent=11 // pred_region
        %p235 = scmp.lt.s32.totalorder %s21, 0
        %s236 = scalar_select %p235, %s21, 0
        %s237 = smul.addr %s236, 4
        %s238 = scalar_lea.vmem %s2, %s237
      $region20: #{adaptive_instance_norm.1} parent=11 // pred_fallthru
        _
      // Predicated region
      $region21: #{adaptive_instance_norm.1} parent=11 // pred_check
        %p239 = pneg %p128
      $region22: #{adaptive_instance_norm.1} parent=11 // pred_check_branch
        %241 = sbr.rel (%p239) target = $region24
      $region23: #{adaptive_instance_norm.1} parent=11 // pred_region
        %p242 = scmp.lt.s32.totalorder %s21, 0
        %s243 = scalar_select %p242, %s21, 0
        %s244 = smul.addr %s243, 4
        %s245 = scalar_lea.vmem %s3, %s244
      $region24: #{adaptive_instance_norm.1} parent=11 // pred_fallthru
        _
      // Predicated region
      $region25: #{adaptive_instance_norm.1} parent=11 // pred_check
        %p246 = pneg %p154
      $region26: #{adaptive_instance_norm.1} parent=11 // pred_check_branch
        %248 = sbr.rel (%p246) target = $region28
      $region27: #{adaptive_instance_norm.1} parent=11 // pred_region
        %p249 = scmp.lt.s32.totalorder %s21, 0
        %s250 = scalar_select %p249, %s21, 0
        %s251 = smul.addr %s250, 4
        %s252 = scalar_lea.vmem %s4, %s251
      $region28: #{adaptive_instance_norm.1} parent=11 // pred_fallthru
        _
    $region12: #{adaptive_instance_norm.1} parent=5 // pred_fallthru
      _
    %p253 = scmp.lt.s32.totalorder %s12, 2
    // Predicated region
    $region29: #{adaptive_instance_norm.1} parent=5 // pred_check
      %p254 = pneg %p253
    $region30: #{adaptive_instance_norm.1} parent=5 // pred_check_branch
      %256 = sbr.rel (%p254) target = $region32
    $region31: #{adaptive_instance_norm.1} parent=5 // pred_region
      // Predicated region
      $region33: #{adaptive_instance_norm.1} parent=31 // pred_check
        %p257 = pneg %p44
      $region34: #{adaptive_instance_norm.1} parent=31 // pred_check_branch
        %259 = sbr.rel (%p257) target = $region36
      $region35: #{adaptive_instance_norm.1} parent=31 // pred_region
        %p260 = scmp.lt.s32.totalorder %s20, 1
        %s261 = scalar_select %p260, %s20, 1
        %s262 = scalar_lea.vmem %s0, %s261
      $region36: #{adaptive_instance_norm.1} parent=31 // pred_fallthru
        _
      // Predicated region
      $region37: #{adaptive_instance_norm.1} parent=31 // pred_check
        %p263 = pneg %p176
      $region38: #{adaptive_instance_norm.1} parent=31 // pred_check_branch
        %265 = sbr.rel (%p263) target = $region40
      $region39: #{adaptive_instance_norm.1} parent=31 // pred_region
        %p266 = scmp.lt.s32.totalorder %s20, 1
        %s267 = scalar_select %p266, %s20, 1
        %p268 = scmp.lt.s32.totalorder %s19, 0
        %s269 = scalar_select %p268, %s19, 0
        %s270 = smul.addr %s269, 2
        %s271 = smul.addr %s267, 2
        %s272 = sadd.s32 %s270, %s271
        %s273 = smul.addr %s272, 4
        %s274 = scalar_lea.vmem %s5, %s273
      $region40: #{adaptive_instance_norm.1} parent=31 // pred_fallthru
        _
    $region32: #{adaptive_instance_norm.1} parent=5 // pred_fallthru
      _
    %p275 = scmp.le.s32.totalorder 1, %s12
    %p276 = scmp.lt.s32.totalorder %s12, 3
    %p277 = pnand %p275, %p276
    %p278 = pneg %p277
    // Predicated region
    $region41: #{adaptive_instance_norm.1} parent=5 // pred_check
      _
    $region42: #{adaptive_instance_norm.1} parent=5 // pred_check_branch
      %280 = sbr.rel (%p277) target = $region44
    $region43: #{adaptive_instance_norm.1} parent=5 // pred_region
      %s281 = ssub.s32 %s12, 1
      %p282 = scmp.lt.s32.totalorder %s22, 1
      %s283 = scalar_select %p282, %s22, 1
      %s284 = scalar_lea.vmem %s0, %s283
      %p285 = pneg %p50
      %p286 = pneg %p47
      %p287 = scmp.lt.s32.totalorder %s21, 0
      %s288 = scalar_select %p287, %s21, 0
      %s289 = smul.addr %s288, 4
      %s290 = scalar_lea.vmem %s1, %s289
      %p291 = pneg %p76
      %p292 = pneg %p73
      %p293 = scmp.lt.s32.totalorder %s21, 0
      %s294 = scalar_select %p293, %s21, 0
      %s295 = smul.addr %s294, 4
      %s296 = scalar_lea.vmem %s2, %s295
      %p297 = pneg %p102
      %p298 = pneg %p99
      %p299 = scmp.lt.s32.totalorder %s21, 0
      %s300 = scalar_select %p299, %s21, 0
      %s301 = smul.addr %s300, 4
      %s302 = scalar_lea.vmem %s3, %s301
      %p303 = pneg %p128
      %p304 = pneg %p125
      %p305 = scmp.lt.s32.totalorder %s21, 0
      %s306 = scalar_select %p305, %s21, 0
      %s307 = smul.addr %s306, 4
      %s308 = scalar_lea.vmem %s4, %s307
      %p309 = pneg %p154
      %p310 = pneg %p151
      %p311 = scmp.lt.s32.totalorder %s22, 1
      %s312 = scalar_select %p311, %s22, 1
      %p313 = scmp.lt.s32.totalorder %s21, 0
      %s314 = scalar_select %p313, %s21, 0
      %s315 = smul.addr %s314, 2
      %s316 = smul.addr %s312, 2
      %s317 = sadd.s32 %s315, %s316
      %s318 = smul.addr %s317, 4
      %s319 = scalar_lea.vmem %s5, %s318
      %p320 = pneg %p182
      %p321 = pneg %p179
      %p322 = pneg %p210
      %p323 = pneg %p207
      %p324 = scmp.lt.s32.totalorder %s22, 1
      %s325 = scalar_select %p324, %s22, 1
      %p326 = scmp.lt.s32.totalorder %s21, 0
      %s327 = scalar_select %p326, %s21, 0
      %s328 = smul.addr %s327, 2
      %s329 = smul.addr %s325, 2
      %s330 = sadd.s32 %s328, %s329
      %s331 = smul.addr %s330, 4
      %s332 = scalar_lea.vmem %s6, %s331
      %p333 = scmp.lt.s32.totalorder %s22, 1
      %s334 = scalar_select %p333, %s22, 1
      %s335 = scalar_lea.vmem %s0, %s334
      %p336 = scmp.lt.s32.totalorder %s21, 0
      %s337 = scalar_select %p336, %s21, 0
      %s338 = smul.addr %s337, 4
      %s339 = scalar_lea.vmem %s1, %s338
      %p340 = scmp.lt.s32.totalorder %s21, 0
      %s341 = scalar_select %p340, %s21, 0
      %s342 = smul.addr %s341, 4
      %s343 = scalar_lea.vmem %s2, %s342
      %p344 = scmp.lt.s32.totalorder %s21, 0
      %s345 = scalar_select %p344, %s21, 0
      %s346 = smul.addr %s345, 4
      %s347 = scalar_lea.vmem %s3, %s346
      %p348 = scmp.lt.s32.totalorder %s21, 0
      %s349 = scalar_select %p348, %s21, 0
      %s350 = smul.addr %s349, 4
      %s351 = scalar_lea.vmem %s4, %s350
      %p352 = scmp.lt.s32.totalorder %s22, 1
      %s353 = scalar_select %p352, %s22, 1
      %p354 = scmp.lt.s32.totalorder %s21, 0
      %s355 = scalar_select %p354, %s21, 0
      %s356 = smul.addr %s355, 2
      %s357 = smul.addr %s353, 2
      %s358 = sadd.s32 %s356, %s357
      %s359 = smul.addr %s358, 4
      %s360 = scalar_lea.vmem %s5, %s359
      %p361 = scmp.lt.s32.totalorder %s22, 1
      %s362 = scalar_select %p361, %s22, 1
      %p363 = scmp.lt.s32.totalorder %s21, 0
      %s364 = scalar_select %p363, %s21, 0
      %s365 = smul.addr %s364, 2
      %s366 = smul.addr %s362, 2
      %s367 = sadd.s32 %s365, %s366
      %s368 = smul.addr %s367, 4
      %s369 = scalar_lea.vmem %s6, %s368
      %v370 = vld [vmem:[%s335] sm:$0x1]
      %v371 = vld [vmem:[%s339] sm:$0xf]
      %v373 = vlaneseq
      %v374 = vshrl.u32 %v373, 7
      %v375 = vsub.s32 0, %v374
      %v376 = vrot.slane %v370, %v375
      %v378 = vmul.f32 %v371, %v376
      %vm379 = vcmask 257024
      %v380 = vsel %vm379, %v378, 0.0
      %381 = vadd.xlane.f32.xlu0 %v380
      %v382 = vpop.xlane.xlu0 %381
      %v383 = vld [vmem:[%s347] sm:$0xf]
      %v384 = vadd.f32 %v382, %v383
      %v385 = vld [vmem:[%s343] sm:$0xf]
      %v386 = vmul.f32 %v385, %v376
      %v387 = vsel %vm379, %v386, 0.0
      %388 = vadd.xlane.f32.xlu0 %v387
      %v389 = vpop.xlane.xlu0 %388
      %v390 = vld [vmem:[%s351] sm:$0xf]
      %v391 = vadd.f32 %v389, %v390
      %v392 = vld [vmem:[%s360] sm:$0xff]
      %v394 = vcombine.high %v392, %v392
      %vm396 = vcmask 1043456
      %v397 = vsel %vm396, %v392, 0.0
      %v398 = vsel %vm396, %v394, 0.0
      %v399 = vadd.f32 %v397, %v398
      %400 = vadd.xlane.f32.xlu0 %v399
      %v401 = vpop.xlane.xlu0 %400
      %v402 = vmul.f32 %v401, 0.00390625
      %v405 = vunpack.c.l.s4 839922192
      %v406 = vunpack.c.0.s8 %v405
      %v407 = vlaneseq
      %v408 = vshrl.u32 %v407, 7
      %v409 = vsub.s32 %v406, %v408
      %v410 = vrot.slane %v402, %v409
      %v412 = vsub.f32 %v392, %v410
      %v413 = vmul.f32 %v412, %v412
      %v415 = vcombine.high %v413, %v413
      %v417 = vsel %vm396, %v413, 0.0
      %v418 = vsel %vm396, %v415, 0.0
      %v419 = vadd.f32 %v417, %v418
      %420 = vadd.xlane.f32.xlu0 %v419
      %v421 = vpop.xlane.xlu0 %420
      %v422 = vmul.f32 %v421, 0.00390625
      %v423 = vadd.f32 %v422, 1e-05
      %v424 = vrsqrt.pop %v423
      %v425 = vmul.f32 %v384, %v424
      %427 = vset.pattern.permute.xlu0 0
      %428 = vperm.xlu0 %427, %v425
      %v429 = vpop.permute.xlu0 %428
      %v432 = vcombine.high %v412, %v412
      %v434 = vmul.f32 %v429, %v412
      %v435 = vmul.f32 %v429, %v432
      %437 = vset.pattern.permute.xlu0 0
      %438 = vperm.xlu0 %437, %v391
      %v439 = vpop.permute.xlu0 %438
      %v441 = vadd.f32 %v434, %v439
      %v442 = vadd.f32 %v435, %v439
      %v445 = vcombine.low %v441, %v442
      %447 = vst [vmem:[%s369] sm:$0xff] %v445
      %p448 = scmp.lt.s32.totalorder %s22, 1
      %s449 = scalar_select %p448, %s22, 1
      %p450 = scmp.lt.s32.totalorder %s21, 0
      %s451 = scalar_select %p450, %s21, 0
      %s452 = smul.addr %s451, 2
      %s453 = smul.addr %s449, 2
      %s454 = sadd.s32 %s452, %s453
      %s455 = smul.addr %s454, 4
      %s456 = scalar_lea.vmem %s6, %s455
      // Predicated region
      $region45: #{adaptive_instance_norm.1} parent=43 // pred_check
        %p457 = pneg %p207
      $region46: #{adaptive_instance_norm.1} parent=43 // pred_check_branch
        %459 = sbr.rel (%p457) target = $region48
      $region47: #{adaptive_instance_norm.1} parent=43 // pred_region
        _
      $region48: #{adaptive_instance_norm.1} parent=43 // pred_fallthru
        _
    $region44: #{adaptive_instance_norm.1} parent=5 // pred_fallthru
      _
    %p460 = scmp.le.s32.totalorder 2, %s12
    // Predicated region
    $region49: #{adaptive_instance_norm.1} parent=5 // pred_check
      %p461 = pneg %p460
    $region50: #{adaptive_instance_norm.1} parent=5 // pred_check_branch
      %463 = sbr.rel (%p461) target = $region52
    $region51: #{adaptive_instance_norm.1} parent=5 // pred_region
      %s464 = ssub.s32 %s12, 2
      // Predicated region
      $region53: #{adaptive_instance_norm.1} parent=51 // pred_check
        %p465 = pneg %p213
      $region54: #{adaptive_instance_norm.1} parent=51 // pred_check_branch
        %467 = sbr.rel (%p465) target = $region56
      $region55: #{adaptive_instance_norm.1} parent=51 // pred_region
        %p468 = scmp.lt.s32.totalorder %s24, 1
        %s469 = scalar_select %p468, %s24, 1
        %p470 = scmp.lt.s32.totalorder %s23, 0
        %s471 = scalar_select %p470, %s23, 0
        %s472 = smul.addr %s471, 2
        %s473 = smul.addr %s469, 2
        %s474 = sadd.s32 %s472, %s473
        %s475 = smul.addr %s474, 4
        %s476 = scalar_lea.vmem %s6, %s475
      $region56: #{adaptive_instance_norm.1} parent=51 // pred_fallthru
        _
    $region52: #{adaptive_instance_norm.1} parent=5 // pred_fallthru
      _
  $region6: #{adaptive_instance_norm.1} parent=0 // loop_footer
    %s16 = sadd.s32 1, %s12
  $region7: #{adaptive_instance_norm.1} parent=0 // loop_footer_branch
    %11 = sbr.rel target = $region3
  $region8: #{adaptive_instance_norm.1} parent=0 // loop_exit
    _

</llo_original>
